<compile_context>
chip_gen: v7x
topology: tpu7x:2x2x1
jax: 0.10.0
libtpu: 0.0.40
codegen_flags: <defaults>
</compile_context>

<pallas_src>
import functools

import numpy as np
import jax
import jax.numpy as jnp
from jax import lax
from jax.experimental import pallas as pl
from jax.experimental.pallas import tpu as pltpu

STDDEV = 0.1
_BLOCK_BYTES = 2 * 1024 * 1024   # ~2 MiB per in/out block (safe on v5e/v6e/v7x)


def _round_up(v, m):
    return ((v + m - 1) // m) * m


def gaussian_noise_kernel(seed_ref, x_ref, o_ref, *, stddev, tile_rows, lane):
    half = lane // 2
    shift = half.bit_length() - 1          # half is a power of two

    # One counter per *pair* of output lanes; per-tile offset is a single
    # scalar broadcast add (hoisted off the vector int-multiply path).
    row = lax.broadcasted_iota(jnp.int32, (tile_rows, half), 0)
    col = lax.broadcasted_iota(jnp.int32, (tile_rows, half), 1)
    base = pl.program_id(0) * (tile_rows * half)          # scalar int32
    cnt = ((row << shift) | col) + base                   # wraps past 2^31 pairs (ok for a hash)

    # ONE Weyl-multiply + murmur3 finalizer per pair (was two full hashes).
    # int32 multiply wraps identically to uint32, so do the seeded step in i32
    # and switch to u32 for the shift/xor finalizer.
    h = (cnt * np.int32(-1640531527) + seed_ref[0]).astype(jnp.uint32)   # * 0x9E3779B9
    h = (h ^ (h >> np.uint32(16))) * np.uint32(0x7FEB352D)
    h = (h ^ (h >> np.uint32(15))) * np.uint32(0x846CA68B)
    h = h ^ (h >> np.uint32(16))

    # Two uniforms from disjoint 16-bit fields of the single hash output.
    hi = (h >> np.uint32(16)).astype(jnp.int32)           # [0, 65536)
    lo = (h & np.uint32(0xFFFF)).astype(jnp.int32)        # [0, 65536)
    u1 = jnp.float32(1.0) - hi.astype(jnp.float32) * np.float32(1.0 / 65536.0)   # (0, 1]
    theta = lo.astype(jnp.float32) * np.float32(2.0 * np.pi / 65536.0)           # [0, 2*pi)

    # Box-Muller, both outputs used.  sin(theta) = sign * sqrt(1 - cos^2):
    # sqrt rides the EUP slot instead of a second trig polynomial on the VPU.
    amp = jnp.float32(stddev) * jnp.sqrt(jnp.float32(-2.0) * jnp.log(u1))
    c = jnp.cos(theta)
    s_abs = jnp.sqrt(jnp.maximum(jnp.float32(1.0) - c * c, jnp.float32(0.0)))
    s = jnp.where(lo < 32768, s_abs, -s_abs)              # sign(sin) over [0, 2*pi)

    # Fused full-lane-width store (halves are 128-aligned -> cheap concat).
    noise = jnp.concatenate([amp * c, amp * s], axis=-1)
    o_ref[...] = (x_ref[...].astype(jnp.float32) + noise).astype(o_ref.dtype)


@functools.partial(jax.jit, static_argnames=("stddev",))
def gaussian_noise(x, seed=0, stddev=STDDEV):
    """x: any shape/float dtype. Returns x + N(0, stddev^2) noise, same shape."""
    orig_shape, orig_dtype = x.shape, x.dtype
    n = x.size
    if n == 0:
        return x

    # Lane-dense 2-D slab.  Prefer a lane width that divides n exactly so we
    # need no pad and no [:n] slice (each is a full extra HBM pass).
    lane = next((c for c in (1024, 512, 256, 128) if n % c == 0), None)
    flat = x.reshape(-1)
    pad = 0
    if lane is None:
        # TODO(synk): handle the ragged tail with an in-kernel masked store to
        # avoid this extra pad + slice HBM pass when n % 128 != 0.
        lane = 128
        pad = _round_up(n, lane) - n
        flat = jnp.pad(flat, (0, pad))
    nrows = (n + pad) // lane

    itemsize = orig_dtype.itemsize
    max_rows = max(8, (_BLOCK_BYTES // (lane * itemsize)) // 8 * 8)
    if nrows <= 8:
        tile_rows = nrows                                  # block == full array dim (allowed)
    else:
        # Aim for >= 2 grid steps so ("parallel",) can split across v7x's 2 TCs.
        tile_rows = min(max_rows, _round_up(-(-nrows // 2), 8))
    num_blocks = -(-nrows // tile_rows)                    # ragged last block is masked by Pallas

    x2d = flat.reshape(nrows, lane)
    seed_arr = jnp.asarray(seed, dtype=jnp.int32).reshape((1,))

    kernel = functools.partial(
        gaussian_noise_kernel,
        stddev=float(stddev), tile_rows=tile_rows, lane=lane)

    out2d = pl.pallas_call(
        kernel,
        out_shape=jax.ShapeDtypeStruct(x2d.shape, x2d.dtype),
        grid_spec=pltpu.PrefetchScalarGridSpec(
            num_scalar_prefetch=1,
            grid=(num_blocks,),
            in_specs=[pl.BlockSpec((tile_rows, lane), lambda i, seed_ref: (i, 0))],
            out_specs=pl.BlockSpec((tile_rows, lane), lambda i, seed_ref: (i, 0)),
        ),
        compiler_params=pltpu.CompilerParams(
            dimension_semantics=("parallel",),
            vmem_limit_bytes=32 * 1024 * 1024,
        ),
    )(seed_arr, x2d)

    out = out2d.reshape(-1)
    if pad:
        out = out[:n]
    return out.reshape(orig_shape)


if __name__ == "__main__":
    key = jax.random.PRNGKey(0)
    x = jax.random.normal(key, (2, 4, 16, 16), dtype=jnp.float32)

    y = gaussian_noise(x, seed=0, stddev=STDDEV)
    y = jax.block_until_ready(y)

    assert y.shape == x.shape and y.dtype == x.dtype

    # Sanity check: the added noise should look like N(0, 0.1^2).
    noise = y - x
    noise_std = float(jnp.std(noise))
    noise_mean = float(jnp.abs(jnp.mean(noise)))
    assert 0.05 < noise_std < 0.2, f"unexpected noise std {noise_std}"
    assert noise_mean < 0.02, f"unexpected noise mean {noise_mean}"

    # Seed is a runtime value: different seed -> different noise (no recompile),
    # same seed -> bitwise reproducible.
    y2 = jax.block_until_ready(gaussian_noise(x, seed=1, stddev=STDDEV))
    y3 = jax.block_until_ready(gaussian_noise(x, seed=0, stddev=STDDEV))
    assert not bool(jnp.allclose(y, y2)), "different seeds produced identical noise"
    assert bool(jnp.allclose(y, y3)), "same seed was not reproducible"

    print("KERNEL_OK")
</pallas_src>

<mosaic_0001>
module attributes {stable_mosaic.version = 11 : i64} {
  func.func @gaussian_noise_kernel(%arg0: i32, %arg1: memref<1xi32, #tpu.memory_space<smem>>, %arg2: memref<2x1024xf32, #tpu.memory_space<vmem>>, %arg3: memref<2x1024xf32, #tpu.memory_space<vmem>>) attributes {dimension_semantics = [#tpu.dimension_semantics<parallel>], iteration_bounds = array<i64: 1>, scalar_prefetch = 1 : i64, scratch_operands = 0 : i64, tpu.core_type = #tpu.core_type<tc>, window_params = [{transform_indices = @transform_0, window_bounds = array<i64: 2, 1024>}, {transform_indices = @transform_1, window_bounds = array<i64: 2, 1024>}]} {
    %0 = tpu.iota {dimensions = array<i32: 0>} : vector<2x512xi32>
    %1 = tpu.iota {dimensions = array<i32: 1>} : vector<2x512xi32>
    %c1024_i32 = arith.constant 1024 : i32
    %2 = arith.muli %arg0, %c1024_i32 : i32
    %c9_i32 = arith.constant 9 : i32
    %3 = vector.broadcast %c9_i32 : i32 to vector<2x512xi32>
    %4 = arith.shli %0, %3 : vector<2x512xi32>
    %5 = arith.ori %4, %1 : vector<2x512xi32>
    %6 = vector.broadcast %2 : i32 to vector<2x512xi32>
    %7 = arith.addi %5, %6 : vector<2x512xi32>
    %c-1640531527_i32 = arith.constant -1640531527 : i32
    %8 = vector.broadcast %c-1640531527_i32 : i32 to vector<2x512xi32>
    %9 = arith.muli %7, %8 : vector<2x512xi32>
    %c0 = arith.constant 0 : index
    %10 = memref.load %arg1[%c0] : memref<1xi32, #tpu.memory_space<smem>>
    %11 = vector.broadcast %10 : i32 to vector<2x512xi32>
    %12 = arith.addi %9, %11 : vector<2x512xi32>
    %c16_i32 = arith.constant 16 : i32
    %13 = vector.broadcast %c16_i32 : i32 to vector<2x512xi32>
    %14 = arith.shrui %12, %13 : vector<2x512xi32>
    %15 = arith.xori %12, %14 : vector<2x512xi32>
    %c2146121005_i32 = arith.constant 2146121005 : i32
    %16 = vector.broadcast %c2146121005_i32 : i32 to vector<2x512xi32>
    %17 = arith.muli %15, %16 : vector<2x512xi32>
    %c15_i32 = arith.constant 15 : i32
    %18 = vector.broadcast %c15_i32 : i32 to vector<2x512xi32>
    %19 = arith.shrui %17, %18 : vector<2x512xi32>
    %20 = arith.xori %17, %19 : vector<2x512xi32>
    %c-2073254261_i32 = arith.constant -2073254261 : i32
    %21 = vector.broadcast %c-2073254261_i32 : i32 to vector<2x512xi32>
    %22 = arith.muli %20, %21 : vector<2x512xi32>
    %c16_i32_0 = arith.constant 16 : i32
    %23 = vector.broadcast %c16_i32_0 : i32 to vector<2x512xi32>
    %24 = arith.shrui %22, %23 : vector<2x512xi32>
    %25 = arith.xori %22, %24 : vector<2x512xi32>
    %c16_i32_1 = arith.constant 16 : i32
    %26 = vector.broadcast %c16_i32_1 : i32 to vector<2x512xi32>
    %27 = arith.shrui %25, %26 : vector<2x512xi32>
    %c65535_i32 = arith.constant 65535 : i32
    %28 = vector.broadcast %c65535_i32 : i32 to vector<2x512xi32>
    %29 = arith.andi %25, %28 : vector<2x512xi32>
    %30 = arith.sitofp %27 : vector<2x512xi32> to vector<2x512xf32>
    %cst = arith.constant 1.52587891E-5 : f32
    %31 = vector.broadcast %cst : f32 to vector<2x512xf32>
    %32 = arith.mulf %30, %31 : vector<2x512xf32>
    %cst_2 = arith.constant 1.000000e+00 : f32
    %33 = vector.broadcast %cst_2 : f32 to vector<2x512xf32>
    %34 = arith.subf %33, %32 : vector<2x512xf32>
    %35 = arith.sitofp %29 : vector<2x512xi32> to vector<2x512xf32>
    %cst_3 = arith.constant 9.587380e-05 : f32
    %36 = vector.broadcast %cst_3 : f32 to vector<2x512xf32>
    %37 = arith.mulf %35, %36 : vector<2x512xf32>
    %38 = math.log %34 : vector<2x512xf32>
    %cst_4 = arith.constant -2.000000e+00 : f32
    %39 = vector.broadcast %cst_4 : f32 to vector<2x512xf32>
    %40 = arith.mulf %39, %38 : vector<2x512xf32>
    %41 = math.sqrt %40 : vector<2x512xf32>
    %cst_5 = arith.constant 1.000000e-01 : f32
    %42 = vector.broadcast %cst_5 : f32 to vector<2x512xf32>
    %43 = arith.mulf %42, %41 : vector<2x512xf32>
    %44 = math.cos %37 : vector<2x512xf32>
    %45 = arith.mulf %44, %44 : vector<2x512xf32>
    %cst_6 = arith.constant 1.000000e+00 : f32
    %46 = vector.broadcast %cst_6 : f32 to vector<2x512xf32>
    %47 = arith.subf %46, %45 : vector<2x512xf32>
    %cst_7 = arith.constant 0.000000e+00 : f32
    %48 = vector.broadcast %cst_7 : f32 to vector<2x512xf32>
    %49 = arith.maximumf %47, %48 : vector<2x512xf32>
    %50 = math.sqrt %49 : vector<2x512xf32>
    %c32768_i32 = arith.constant 32768 : i32
    %51 = vector.broadcast %c32768_i32 : i32 to vector<2x512xi32>
    %52 = arith.cmpi slt, %29, %51 : vector<2x512xi32>
    %cst_8 = arith.constant 0.000000e+00 : f32
    %53 = vector.broadcast %cst_8 : f32 to vector<2x512xf32>
    %54 = arith.subf %53, %50 : vector<2x512xf32>
    %55 = arith.select %52, %50, %54 : vector<2x512xi1>, vector<2x512xf32>
    %56 = arith.mulf %43, %44 : vector<2x512xf32>
    %57 = arith.mulf %43, %55 : vector<2x512xf32>
    %58 = tpu.concatenate %56, %57 in 1 : vector<2x512xf32>, vector<2x512xf32> -> vector<2x1024xf32>
    %c0_9 = arith.constant 0 : index
    %c0_10 = arith.constant 0 : index
    %59 = vector.load %arg2[%c0_9, %c0_10] : memref<2x1024xf32, #tpu.memory_space<vmem>>, vector<2x1024xf32>
    %60 = arith.addf %59, %58 : vector<2x1024xf32>
    %c0_11 = arith.constant 0 : index
    %c0_12 = arith.constant 0 : index
    %61 = vector.load %arg3[%c0_11, %c0_12] : memref<2x1024xf32, #tpu.memory_space<vmem>>, vector<2x1024xf32>
    tpu.vector_store %arg3[%c0_11, %c0_12], %60 {strides = array<i32>} : memref<2x1024xf32, #tpu.memory_space<vmem>>, vector<2x1024xf32>,
    return
  }
  func.func @transform_0(%arg0: i32, %arg1: memref<1xi32, #tpu.memory_space<smem>>) -> (i32, i32) {
    %c0_i32 = arith.constant 0 : i32
    %c0_i32_0 = arith.constant 0 : i32
    return %arg0, %c0_i32 : i32, i32
  }
  func.func @transform_1(%arg0: i32, %arg1: memref<1xi32, #tpu.memory_space<smem>>) -> (i32, i32) {
    %c0_i32 = arith.constant 0 : i32
    %c0_i32_0 = arith.constant 0 : i32
    return %arg0, %c0_i32 : i32, i32
  }
}

</mosaic_0001>

<llo_original>
// kernel: gaussian_noise.1
$region0: #{gaussian_noise.1}
  #allocation0 [shape = 'u32[]', space=smem, size = 0x4, offset = 0x4, fixed_abs, tag = 'smem constant byte address 0x4 - core index']
  #allocation1 [shape = 'u32[144,128]{1,0:T(1,128)}', space=vmem, size = 0x12000, scoped, tag = 'internal scratch']
  #allocation2 [shape = 's32[1]{0}', space=sflag, size = 0x4, scoped, tag = 'scoped memory for gaussian_noise.1']
  #allocation3 [shape = 's32[1]{0:T(128)S(6)}', space=smem, size = 0x200, scoped, tag = 'prefetched SMEM operand 0']
  %s0 = inlined_call_operand.<no memory space> [shape: s32[1], index: 0, kind: input, shape index: {}]
  %s1 = inlined_call_operand.vmem [shape: f32[2,1024], index: 1, kind: input, shape index: {}]
  %s2 = inlined_call_operand.vmem [shape: f32[2,1024], index: 2, kind: output, shape index: {}]
  %s3 = sld [smem:[#allocation0]]
  $region14: #{gaussian_noise.1} parent=0
    _
  %s5 = ssub.s32 1, %s3
  %s6 = scalar_select 0, %s5, %s3
  %7 = sst [smem:[#allocation3]] %s0
  // Predicated region
  $region2: #{gaussian_noise.1} parent=0 // pred_check
    _
  $region3: #{gaussian_noise.1} parent=0 // pred_check_branch
    %9 = sbr.rel (0) target = $region5
  $region4: #{gaussian_noise.1} parent=0 // pred_region
    _
  $region5: #{gaussian_noise.1} parent=0 // pred_fallthru
    _
  %v10 = vlaneseq
  %v11 = vshrl.u32 %v10, 7
  %v12 = vlaneseq
  %v13 = vand.u32 %v12, 127
  %v14 = vadd.s32 %v13, 128
  %v15 = vadd.s32 %v13, 256
  %v16 = vadd.s32 %v13, 384
  %s17 = smul.u32 0, 1024
  %v18 = vshll.u32 %v11, 9
  %v19 = vor.u32 %v18, %v13
  %v20 = vor.u32 %v18, %v14
  %v21 = vor.u32 %v18, %v15
  %v22 = vor.u32 %v18, %v16
  %v23 = vstv %s17
  %v24 = vadd.s32 %v19, %v23
  %v25 = vadd.s32 %v20, %v23
  %v26 = vadd.s32 %v21, %v23
  %v27 = vadd.s32 %v22, %v23
  %v28 = vmul.u32 %v24, 2654435769
  %v29 = vmul.u32 %v25, 2654435769
  %v30 = vmul.u32 %v26, 2654435769
  %v31 = vmul.u32 %v27, 2654435769
  %s32 = sld [smem:[#allocation3]]
  %v33 = vstv %s32
  %v34 = vadd.s32 %v28, %v33
  %v35 = vadd.s32 %v29, %v33
  %v36 = vadd.s32 %v30, %v33
  %v37 = vadd.s32 %v31, %v33
  %v38 = vshrl.u32 %v34, 16
  %v39 = vshrl.u32 %v35, 16
  %v40 = vshrl.u32 %v36, 16
  %v41 = vshrl.u32 %v37, 16
  %v42 = vxor.u32 %v34, %v38
  %v43 = vxor.u32 %v35, %v39
  %v44 = vxor.u32 %v36, %v40
  %v45 = vxor.u32 %v37, %v41
  %v46 = vmul.u32 %v42, 2146121005
  %v47 = vmul.u32 %v43, 2146121005
  %v48 = vmul.u32 %v44, 2146121005
  %v49 = vmul.u32 %v45, 2146121005
  %v50 = vshrl.u32 %v46, 15
  %v51 = vshrl.u32 %v47, 15
  %v52 = vshrl.u32 %v48, 15
  %v53 = vshrl.u32 %v49, 15
  %v54 = vxor.u32 %v46, %v50
  %v55 = vxor.u32 %v47, %v51
  %v56 = vxor.u32 %v48, %v52
  %v57 = vxor.u32 %v49, %v53
  %v58 = vmul.u32 %v54, 2221713035
  %v59 = vmul.u32 %v55, 2221713035
  %v60 = vmul.u32 %v56, 2221713035
  %v61 = vmul.u32 %v57, 2221713035
  %v62 = vshrl.u32 %v58, 16
  %v63 = vshrl.u32 %v59, 16
  %v64 = vshrl.u32 %v60, 16
  %v65 = vshrl.u32 %v61, 16
  %v66 = vxor.u32 %v58, %v62
  %v67 = vxor.u32 %v59, %v63
  %v68 = vxor.u32 %v60, %v64
  %v69 = vxor.u32 %v61, %v65
  %v70 = vshrl.u32 %v66, 16
  %v71 = vshrl.u32 %v67, 16
  %v72 = vshrl.u32 %v68, 16
  %v73 = vshrl.u32 %v69, 16
  %v74 = vand.u32 %v66, 65535
  %v75 = vand.u32 %v67, 65535
  %v76 = vand.u32 %v68, 65535
  %v77 = vand.u32 %v69, 65535
  %v78 = vcvt.s32.f32 %v70
  %v79 = vcvt.s32.f32 %v71
  %v80 = vcvt.s32.f32 %v72
  %v81 = vcvt.s32.f32 %v73
  %v82 = vmul.f32 %v78, 1.5258789e-05
  %v83 = vmul.f32 %v79, 1.5258789e-05
  %v84 = vmul.f32 %v80, 1.5258789e-05
  %v85 = vmul.f32 %v81, 1.5258789e-05
  %v86 = vsub.f32 1.0, %v82
  %v87 = vsub.f32 1.0, %v83
  %v88 = vsub.f32 1.0, %v84
  %v89 = vsub.f32 1.0, %v85
  %v90 = vcvt.s32.f32 %v74
  %v91 = vcvt.s32.f32 %v75
  %v92 = vcvt.s32.f32 %v76
  %v93 = vcvt.s32.f32 %v77
  %v94 = vmul.f32 %v90, 9.58738e-05
  %v95 = vmul.f32 %v91, 9.58738e-05
  %v96 = vmul.f32 %v92, 9.58738e-05
  %v97 = vmul.f32 %v93, 9.58738e-05
  %v98 = vlog2.pop %v86
  %v99 = vmul.f32 %v98, 0.6931472
  %v100 = vlog2.pop %v87
  %v101 = vmul.f32 %v100, 0.6931472
  %v102 = vlog2.pop %v88
  %v103 = vmul.f32 %v102, 0.6931472
  %v104 = vlog2.pop %v89
  %v105 = vmul.f32 %v104, 0.6931472
  %v106 = vmul.f32 %v99, -2.0
  %v107 = vmul.f32 %v101, -2.0
  %v108 = vmul.f32 %v103, -2.0
  %v109 = vmul.f32 %v105, -2.0
  %v110 = vrsqrt.pop %v106
  %v111 = vmul.f32 %v106, %v110
  %vm112 = vcmp.eq.f32.partialorder %v106, inf
  %v113 = vsel %vm112, %v106, %v111
  %vm114 = vcmp.eq.f32.partialorder %v106, 0.0
  %v115 = vand.u32 %v106, 2147483648
  %v116 = vsel %vm114, %v115, %v113
  %v117 = vrsqrt.pop %v107
  %v118 = vmul.f32 %v107, %v117
  %vm119 = vcmp.eq.f32.partialorder %v107, inf
  %v120 = vsel %vm119, %v107, %v118
  %vm121 = vcmp.eq.f32.partialorder %v107, 0.0
  %v122 = vand.u32 %v107, 2147483648
  %v123 = vsel %vm121, %v122, %v120
  %v124 = vrsqrt.pop %v108
  %v125 = vmul.f32 %v108, %v124
  %vm126 = vcmp.eq.f32.partialorder %v108, inf
  %v127 = vsel %vm126, %v108, %v125
  %vm128 = vcmp.eq.f32.partialorder %v108, 0.0
  %v129 = vand.u32 %v108, 2147483648
  %v130 = vsel %vm128, %v129, %v127
  %v131 = vrsqrt.pop %v109
  %v132 = vmul.f32 %v109, %v131
  %vm133 = vcmp.eq.f32.partialorder %v109, inf
  %v134 = vsel %vm133, %v109, %v132
  %vm135 = vcmp.eq.f32.partialorder %v109, 0.0
  %v136 = vand.u32 %v109, 2147483648
  %v137 = vsel %vm135, %v136, %v134
  %v138 = vmul.f32 %v116, 0.1
  %v139 = vmul.f32 %v123, 0.1
  %v140 = vmul.f32 %v130, 0.1
  %v141 = vmul.f32 %v137, 0.1
  %v142 = vand.u32 2147483647, %v94
  %vm143 = vcmp.le.f32.partialorder %v142, 0.7853982
  %vm144 = vcmp.lt.s32.totalorder %v94, 0
  %v145 = vand.u32 %v94, 2139095040
  %v146 = vshrl.u32 %v145, 23
  %v147 = vsub.s32 %v146, 127
  %v148 = vand.u32 2147483647, %v94
  %v149 = vand.u32 %v148, 8388607
  %v150 = vor.u32 %v149, 8388608
  %v151 = vsub.s32 0, %v150
  %v152 = vadd.s32 %v147, 1
  %vm153 = vcmp.gt.s32.totalorder %v152, 0
  %v154 = vsel %vm153, %v152, 0
  %v155 = vshrl.u32 %v154, 5
  %v156 = vand.u32 %v154, 31
  %v157 = vsub.s32 32, %v156
  %v158 = vshrl.u32 683565275, %v157
  %v159 = vshll.u32 683565275, %v156
  %v160 = vshrl.u32 2475754826, %v157
  %v161 = vor.u32 %v159, %v160
  %v162 = vshll.u32 2475754826, %v156
  %v163 = vshrl.u32 2131351028, %v157
  %v164 = vor.u32 %v162, %v163
  %v165 = vshll.u32 2131351028, %v156
  %v166 = vshrl.u32 2102212464, %v157
  %v167 = vor.u32 %v165, %v166
  %v168 = vshll.u32 2102212464, %v156
  %v169 = vshrl.u32 920167782, %v157
  %v170 = vor.u32 %v168, %v169
  %v171 = vshll.u32 920167782, %v156
  %v172 = vshrl.u32 1326507024, %v157
  %v173 = vor.u32 %v171, %v172
  %vm174 = vcmp.lt.s32.totalorder %v155, 1
  %vm175 = vcmp.lt.s32.totalorder %v155, 2
  %vm176 = vcmp.lt.s32.totalorder %v155, 3
  %vm177 = vcmp.lt.s32.totalorder %v155, 4
  %v178 = vsel %vm174, %v158, %v161
  %v179 = vsel %vm177, %v167, 2102212464
  %v180 = vsel %vm176, %v164, %v179
  %v181 = vsel %vm175, %v178, %v180
  %v182 = vsel %vm174, %v161, %v164
  %v183 = vsel %vm177, %v170, 920167782
  %v184 = vsel %vm176, %v167, %v183
  %v185 = vsel %vm175, %v182, %v184
  %v186 = vsel %vm174, %v164, %v167
  %v187 = vsel %vm177, %v173, 1326507024
  %v188 = vsel %vm176, %v170, %v187
  %v189 = vsel %vm175, %v186, %v188
  %v190 = vshll.u32 %v150, 8
  %v191 = vmul.u32.u64.compose %v190, %v189
  %v192 = vextract.low.u32 %v191
  %v193 = vextract.high.u32 %v191
  %v194 = vmul.u32.u64.compose %v190, %v185
  %v195 = vextract.low.u32 %v194
  %v196 = vextract.high.u32 %v194
  %v197 = vmul.u32 %v190, %v181
  %v198 = vadd.s32 %v193, %v195
  %vm199 = vc.u32 %v193, %v195
  %v200 = vadd.s32 %v196, 1
  %v201 = vsel %vm199, %v200, %v196
  %v202 = vadd.s32 %v197, %v201
  %v203 = vadd.s32 %v202, 536870912
  %v204 = vshrl.u32 %v203, 30
  %v205 = vshll.u32 %v204, 30
  %v206 = vsub.s32 %v202, %v205
  %vm207 = vcmp.lt.s32.totalorder %v206, 0
  %v208 = vsub.s32 0, %v206
  %v209 = vsel %vm207, %v208, %v206
  %v210 = vclz %v209
  %v211 = vsub.s32 %v210, 2
  %vm212 = vcmp.gt.s32.totalorder 0, %v211
  %v213 = vsel %vm212, 0, %v211
  %v214 = vsub.s32 32, %v213
  %v215 = vshll.u32 %v206, %v213
  %v216 = vshrl.u32 %v198, %v214
  %v217 = vor.u32 %v215, %v216
  %v218 = vsub.s32 4294967266, %v213
  %v219 = vadd.s32 %v218, 127
  %v220 = vshll.u32 %v219, 23
  %v221 = vor.u32 4788187, %v220
  %v222 = vand.u32 2147483647, %v221
  %v224 = vcvt.s32.f32 %v217
  %v225 = vmul.f32 %v224, %v222
  %v226 = vxor.u32 %v225, 2147483648
  %v227 = vsel %vm144, %v226, %v225
  %v228 = vsub.s32 4, %v204
  %v229 = vsel %vm144, %v228, %v204
  %v230 = vsel %vm143, %v94, %v227
  %v231 = vsel %vm143, 0, %v229
  %v232 = vcosq.f32.pop %v230
  %v233 = vsinq.f32.pop %v230
  %vm234 = vweird.f32 %v94
  %v235 = vand.u32 %v231, 3
  %vm236 = vcmp.lt.s32.totalorder %v235, 2
  %vm237 = vcmp.eq.s32.totalorder %v235, 0
  %v238 = vxor.u32 %v233, 2147483648
  %v239 = vsel %vm237, %v232, %v238
  %vm240 = vcmp.eq.s32.totalorder %v235, 2
  %v241 = vxor.u32 %v232, 2147483648
  %v242 = vsel %vm240, %v241, %v233
  %v243 = vsel %vm236, %v239, %v242
  %v244 = vsel %vm234, nan, %v243
  %v245 = vand.u32 2147483647, %v95
  %vm246 = vcmp.le.f32.partialorder %v245, 0.7853982
  %vm247 = vcmp.lt.s32.totalorder %v95, 0
  %v248 = vand.u32 %v95, 2139095040
  %v249 = vshrl.u32 %v248, 23
  %v250 = vsub.s32 %v249, 127
  %v251 = vand.u32 2147483647, %v95
  %v252 = vand.u32 %v251, 8388607
  %v253 = vor.u32 %v252, 8388608
  %v254 = vsub.s32 0, %v253
  %v255 = vadd.s32 %v250, 1
  %vm256 = vcmp.gt.s32.totalorder %v255, 0
  %v257 = vsel %vm256, %v255, 0
  %v258 = vshrl.u32 %v257, 5
  %v259 = vand.u32 %v257, 31
  %v260 = vsub.s32 32, %v259
  %v261 = vshrl.u32 683565275, %v260
  %v262 = vshll.u32 683565275, %v259
  %v263 = vshrl.u32 2475754826, %v260
  %v264 = vor.u32 %v262, %v263
  %v265 = vshll.u32 2475754826, %v259
  %v266 = vshrl.u32 2131351028, %v260
  %v267 = vor.u32 %v265, %v266
  %v268 = vshll.u32 2131351028, %v259
  %v269 = vshrl.u32 2102212464, %v260
  %v270 = vor.u32 %v268, %v269
  %v271 = vshll.u32 2102212464, %v259
  %v272 = vshrl.u32 920167782, %v260
  %v273 = vor.u32 %v271, %v272
  %v274 = vshll.u32 920167782, %v259
  %v275 = vshrl.u32 1326507024, %v260
  %v276 = vor.u32 %v274, %v275
  %vm277 = vcmp.lt.s32.totalorder %v258, 1
  %vm278 = vcmp.lt.s32.totalorder %v258, 2
  %vm279 = vcmp.lt.s32.totalorder %v258, 3
  %vm280 = vcmp.lt.s32.totalorder %v258, 4
  %v281 = vsel %vm277, %v261, %v264
  %v282 = vsel %vm280, %v270, 2102212464
  %v283 = vsel %vm279, %v267, %v282
  %v284 = vsel %vm278, %v281, %v283
  %v285 = vsel %vm277, %v264, %v267
  %v286 = vsel %vm280, %v273, 920167782
  %v287 = vsel %vm279, %v270, %v286
  %v288 = vsel %vm278, %v285, %v287
  %v289 = vsel %vm277, %v267, %v270
  %v290 = vsel %vm280, %v276, 1326507024
  %v291 = vsel %vm279, %v273, %v290
  %v292 = vsel %vm278, %v289, %v291
  %v293 = vshll.u32 %v253, 8
  %v294 = vmul.u32.u64.compose %v293, %v292
  %v295 = vextract.low.u32 %v294
  %v296 = vextract.high.u32 %v294
  %v297 = vmul.u32.u64.compose %v293, %v288
  %v298 = vextract.low.u32 %v297
  %v299 = vextract.high.u32 %v297
  %v300 = vmul.u32 %v293, %v284
  %v301 = vadd.s32 %v296, %v298
  %vm302 = vc.u32 %v296, %v298
  %v303 = vadd.s32 %v299, 1
  %v304 = vsel %vm302, %v303, %v299
  %v305 = vadd.s32 %v300, %v304
  %v306 = vadd.s32 %v305, 536870912
  %v307 = vshrl.u32 %v306, 30
  %v308 = vshll.u32 %v307, 30
  %v309 = vsub.s32 %v305, %v308
  %vm310 = vcmp.lt.s32.totalorder %v309, 0
  %v311 = vsub.s32 0, %v309
  %v312 = vsel %vm310, %v311, %v309
  %v313 = vclz %v312
  %v314 = vsub.s32 %v313, 2
  %vm315 = vcmp.gt.s32.totalorder 0, %v314
  %v316 = vsel %vm315, 0, %v314
  %v317 = vsub.s32 32, %v316
  %v318 = vshll.u32 %v309, %v316
  %v319 = vshrl.u32 %v301, %v317
  %v320 = vor.u32 %v318, %v319
  %v321 = vsub.s32 4294967266, %v316
  %v322 = vadd.s32 %v321, 127
  %v323 = vshll.u32 %v322, 23
  %v324 = vor.u32 4788187, %v323
  %v325 = vand.u32 2147483647, %v324
  %v327 = vcvt.s32.f32 %v320
  %v328 = vmul.f32 %v327, %v325
  %v329 = vxor.u32 %v328, 2147483648
  %v330 = vsel %vm247, %v329, %v328
  %v331 = vsub.s32 4, %v307
  %v332 = vsel %vm247, %v331, %v307
  %v333 = vsel %vm246, %v95, %v330
  %v334 = vsel %vm246, 0, %v332
  %v335 = vcosq.f32.pop %v333
  %v336 = vsinq.f32.pop %v333
  %vm337 = vweird.f32 %v95
  %v338 = vand.u32 %v334, 3
  %vm339 = vcmp.lt.s32.totalorder %v338, 2
  %vm340 = vcmp.eq.s32.totalorder %v338, 0
  %v341 = vxor.u32 %v336, 2147483648
  %v342 = vsel %vm340, %v335, %v341
  %vm343 = vcmp.eq.s32.totalorder %v338, 2
  %v344 = vxor.u32 %v335, 2147483648
  %v345 = vsel %vm343, %v344, %v336
  %v346 = vsel %vm339, %v342, %v345
  %v347 = vsel %vm337, nan, %v346
  %v348 = vand.u32 2147483647, %v96
  %vm349 = vcmp.le.f32.partialorder %v348, 0.7853982
  %vm350 = vcmp.lt.s32.totalorder %v96, 0
  %v351 = vand.u32 %v96, 2139095040
  %v352 = vshrl.u32 %v351, 23
  %v353 = vsub.s32 %v352, 127
  %v354 = vand.u32 2147483647, %v96
  %v355 = vand.u32 %v354, 8388607
  %v356 = vor.u32 %v355, 8388608
  %v357 = vsub.s32 0, %v356
  %v358 = vadd.s32 %v353, 1
  %vm359 = vcmp.gt.s32.totalorder %v358, 0
  %v360 = vsel %vm359, %v358, 0
  %v361 = vshrl.u32 %v360, 5
  %v362 = vand.u32 %v360, 31
  %v363 = vsub.s32 32, %v362
  %v364 = vshrl.u32 683565275, %v363
  %v365 = vshll.u32 683565275, %v362
  %v366 = vshrl.u32 2475754826, %v363
  %v367 = vor.u32 %v365, %v366
  %v368 = vshll.u32 2475754826, %v362
  %v369 = vshrl.u32 2131351028, %v363
  %v370 = vor.u32 %v368, %v369
  %v371 = vshll.u32 2131351028, %v362
  %v372 = vshrl.u32 2102212464, %v363
  %v373 = vor.u32 %v371, %v372
  %v374 = vshll.u32 2102212464, %v362
  %v375 = vshrl.u32 920167782, %v363
  %v376 = vor.u32 %v374, %v375
  %v377 = vshll.u32 920167782, %v362
  %v378 = vshrl.u32 1326507024, %v363
  %v379 = vor.u32 %v377, %v378
  %vm380 = vcmp.lt.s32.totalorder %v361, 1
  %vm381 = vcmp.lt.s32.totalorder %v361, 2
  %vm382 = vcmp.lt.s32.totalorder %v361, 3
  %vm383 = vcmp.lt.s32.totalorder %v361, 4
  %v384 = vsel %vm380, %v364, %v367
  %v385 = vsel %vm383, %v373, 2102212464
  %v386 = vsel %vm382, %v370, %v385
  %v387 = vsel %vm381, %v384, %v386
  %v388 = vsel %vm380, %v367, %v370
  %v389 = vsel %vm383, %v376, 920167782
  %v390 = vsel %vm382, %v373, %v389
  %v391 = vsel %vm381, %v388, %v390
  %v392 = vsel %vm380, %v370, %v373
  %v393 = vsel %vm383, %v379, 1326507024
  %v394 = vsel %vm382, %v376, %v393
  %v395 = vsel %vm381, %v392, %v394
  %v396 = vshll.u32 %v356, 8
  %v397 = vmul.u32.u64.compose %v396, %v395
  %v398 = vextract.low.u32 %v397
  %v399 = vextract.high.u32 %v397
  %v400 = vmul.u32.u64.compose %v396, %v391
  %v401 = vextract.low.u32 %v400
  %v402 = vextract.high.u32 %v400
  %v403 = vmul.u32 %v396, %v387
  %v404 = vadd.s32 %v399, %v401
  %vm405 = vc.u32 %v399, %v401
  %v406 = vadd.s32 %v402, 1
  %v407 = vsel %vm405, %v406, %v402
  %v408 = vadd.s32 %v403, %v407
  %v409 = vadd.s32 %v408, 536870912
  %v410 = vshrl.u32 %v409, 30
  %v411 = vshll.u32 %v410, 30
  %v412 = vsub.s32 %v408, %v411
  %vm413 = vcmp.lt.s32.totalorder %v412, 0
  %v414 = vsub.s32 0, %v412
  %v415 = vsel %vm413, %v414, %v412
  %v416 = vclz %v415
  %v417 = vsub.s32 %v416, 2
  %vm418 = vcmp.gt.s32.totalorder 0, %v417
  %v419 = vsel %vm418, 0, %v417
  %v420 = vsub.s32 32, %v419
  %v421 = vshll.u32 %v412, %v419
  %v422 = vshrl.u32 %v404, %v420
  %v423 = vor.u32 %v421, %v422
  %v424 = vsub.s32 4294967266, %v419
  %v425 = vadd.s32 %v424, 127
  %v426 = vshll.u32 %v425, 23
  %v427 = vor.u32 4788187, %v426
  %v428 = vand.u32 2147483647, %v427
  %v430 = vcvt.s32.f32 %v423
  %v431 = vmul.f32 %v430, %v428
  %v432 = vxor.u32 %v431, 2147483648
  %v433 = vsel %vm350, %v432, %v431
  %v434 = vsub.s32 4, %v410
  %v435 = vsel %vm350, %v434, %v410
  %v436 = vsel %vm349, %v96, %v433
  %v437 = vsel %vm349, 0, %v435
  %v438 = vcosq.f32.pop %v436
  %v439 = vsinq.f32.pop %v436
  %vm440 = vweird.f32 %v96
  %v441 = vand.u32 %v437, 3
  %vm442 = vcmp.lt.s32.totalorder %v441, 2
  %vm443 = vcmp.eq.s32.totalorder %v441, 0
  %v444 = vxor.u32 %v439, 2147483648
  %v445 = vsel %vm443, %v438, %v444
  %vm446 = vcmp.eq.s32.totalorder %v441, 2
  %v447 = vxor.u32 %v438, 2147483648
  %v448 = vsel %vm446, %v447, %v439
  %v449 = vsel %vm442, %v445, %v448
  %v450 = vsel %vm440, nan, %v449
  %v451 = vand.u32 2147483647, %v97
  %vm452 = vcmp.le.f32.partialorder %v451, 0.7853982
  %vm453 = vcmp.lt.s32.totalorder %v97, 0
  %v454 = vand.u32 %v97, 2139095040
  %v455 = vshrl.u32 %v454, 23
  %v456 = vsub.s32 %v455, 127
  %v457 = vand.u32 2147483647, %v97
  %v458 = vand.u32 %v457, 8388607
  %v459 = vor.u32 %v458, 8388608
  %v460 = vsub.s32 0, %v459
  %v461 = vadd.s32 %v456, 1
  %vm462 = vcmp.gt.s32.totalorder %v461, 0
  %v463 = vsel %vm462, %v461, 0
  %v464 = vshrl.u32 %v463, 5
  %v465 = vand.u32 %v463, 31
  %v466 = vsub.s32 32, %v465
  %v467 = vshrl.u32 683565275, %v466
  %v468 = vshll.u32 683565275, %v465
  %v469 = vshrl.u32 2475754826, %v466
  %v470 = vor.u32 %v468, %v469
  %v471 = vshll.u32 2475754826, %v465
  %v472 = vshrl.u32 2131351028, %v466
  %v473 = vor.u32 %v471, %v472
  %v474 = vshll.u32 2131351028, %v465
  %v475 = vshrl.u32 2102212464, %v466
  %v476 = vor.u32 %v474, %v475
  %v477 = vshll.u32 2102212464, %v465
  %v478 = vshrl.u32 920167782, %v466
  %v479 = vor.u32 %v477, %v478
  %v480 = vshll.u32 920167782, %v465
  %v481 = vshrl.u32 1326507024, %v466
  %v482 = vor.u32 %v480, %v481
  %vm483 = vcmp.lt.s32.totalorder %v464, 1
  %vm484 = vcmp.lt.s32.totalorder %v464, 2
  %vm485 = vcmp.lt.s32.totalorder %v464, 3
  %vm486 = vcmp.lt.s32.totalorder %v464, 4
  %v487 = vsel %vm483, %v467, %v470
  %v488 = vsel %vm486, %v476, 2102212464
  %v489 = vsel %vm485, %v473, %v488
  %v490 = vsel %vm484, %v487, %v489
  %v491 = vsel %vm483, %v470, %v473
  %v492 = vsel %vm486, %v479, 920167782
  %v493 = vsel %vm485, %v476, %v492
  %v494 = vsel %vm484, %v491, %v493
  %v495 = vsel %vm483, %v473, %v476
  %v496 = vsel %vm486, %v482, 1326507024
  %v497 = vsel %vm485, %v479, %v496
  %v498 = vsel %vm484, %v495, %v497
  %v499 = vshll.u32 %v459, 8
  %v500 = vmul.u32.u64.compose %v499, %v498
  %v501 = vextract.low.u32 %v500
  %v502 = vextract.high.u32 %v500
  %v503 = vmul.u32.u64.compose %v499, %v494
  %v504 = vextract.low.u32 %v503
  %v505 = vextract.high.u32 %v503
  %v506 = vmul.u32 %v499, %v490
  %v507 = vadd.s32 %v502, %v504
  %vm508 = vc.u32 %v502, %v504
  %v509 = vadd.s32 %v505, 1
  %v510 = vsel %vm508, %v509, %v505
  %v511 = vadd.s32 %v506, %v510
  %v512 = vadd.s32 %v511, 536870912
  %v513 = vshrl.u32 %v512, 30
  %v514 = vshll.u32 %v513, 30
  %v515 = vsub.s32 %v511, %v514
  %vm516 = vcmp.lt.s32.totalorder %v515, 0
  %v517 = vsub.s32 0, %v515
  %v518 = vsel %vm516, %v517, %v515
  %v519 = vclz %v518
  %v520 = vsub.s32 %v519, 2
  %vm521 = vcmp.gt.s32.totalorder 0, %v520
  %v522 = vsel %vm521, 0, %v520
  %v523 = vsub.s32 32, %v522
  %v524 = vshll.u32 %v515, %v522
  %v525 = vshrl.u32 %v507, %v523
  %v526 = vor.u32 %v524, %v525
  %v527 = vsub.s32 4294967266, %v522
  %v528 = vadd.s32 %v527, 127
  %v529 = vshll.u32 %v528, 23
  %v530 = vor.u32 4788187, %v529
  %v531 = vand.u32 2147483647, %v530
  %v533 = vcvt.s32.f32 %v526
  %v534 = vmul.f32 %v533, %v531
  %v535 = vxor.u32 %v534, 2147483648
  %v536 = vsel %vm453, %v535, %v534
  %v537 = vsub.s32 4, %v513
  %v538 = vsel %vm453, %v537, %v513
  %v539 = vsel %vm452, %v97, %v536
  %v540 = vsel %vm452, 0, %v538
  %v541 = vcosq.f32.pop %v539
  %v542 = vsinq.f32.pop %v539
  %vm543 = vweird.f32 %v97
  %v544 = vand.u32 %v540, 3
  %vm545 = vcmp.lt.s32.totalorder %v544, 2
  %vm546 = vcmp.eq.s32.totalorder %v544, 0
  %v547 = vxor.u32 %v542, 2147483648
  %v548 = vsel %vm546, %v541, %v547
  %vm549 = vcmp.eq.s32.totalorder %v544, 2
  %v550 = vxor.u32 %v541, 2147483648
  %v551 = vsel %vm549, %v550, %v542
  %v552 = vsel %vm545, %v548, %v551
  %v553 = vsel %vm543, nan, %v552
  %v554 = vmul.f32 %v244, %v244
  %v555 = vmul.f32 %v347, %v347
  %v556 = vmul.f32 %v450, %v450
  %v557 = vmul.f32 %v553, %v553
  %v558 = vsub.f32 1.0, %v554
  %v559 = vsub.f32 1.0, %v555
  %v560 = vsub.f32 1.0, %v556
  %v561 = vsub.f32 1.0, %v557
  %v562 = vmax.f32 %v558, 0.0
  %v563 = vmax.f32 %v559, 0.0
  %v564 = vmax.f32 %v560, 0.0
  %v565 = vmax.f32 %v561, 0.0
  %v566 = vrsqrt.pop %v562
  %v567 = vmul.f32 %v562, %v566
  %vm568 = vcmp.eq.f32.partialorder %v562, inf
  %v569 = vsel %vm568, %v562, %v567
  %vm570 = vcmp.eq.f32.partialorder %v562, 0.0
  %v571 = vand.u32 %v562, 2147483648
  %v572 = vsel %vm570, %v571, %v569
  %v573 = vrsqrt.pop %v563
  %v574 = vmul.f32 %v563, %v573
  %vm575 = vcmp.eq.f32.partialorder %v563, inf
  %v576 = vsel %vm575, %v563, %v574
  %vm577 = vcmp.eq.f32.partialorder %v563, 0.0
  %v578 = vand.u32 %v563, 2147483648
  %v579 = vsel %vm577, %v578, %v576
  %v580 = vrsqrt.pop %v564
  %v581 = vmul.f32 %v564, %v580
  %vm582 = vcmp.eq.f32.partialorder %v564, inf
  %v583 = vsel %vm582, %v564, %v581
  %vm584 = vcmp.eq.f32.partialorder %v564, 0.0
  %v585 = vand.u32 %v564, 2147483648
  %v586 = vsel %vm584, %v585, %v583
  %v587 = vrsqrt.pop %v565
  %v588 = vmul.f32 %v565, %v587
  %vm589 = vcmp.eq.f32.partialorder %v565, inf
  %v590 = vsel %vm589, %v565, %v588
  %vm591 = vcmp.eq.f32.partialorder %v565, 0.0
  %v592 = vand.u32 %v565, 2147483648
  %v593 = vsel %vm591, %v592, %v590
  %vm594 = vcmp.lt.s32.totalorder %v74, 32768
  %vm595 = vcmp.lt.s32.totalorder %v75, 32768
  %vm596 = vcmp.lt.s32.totalorder %v76, 32768
  %vm597 = vcmp.lt.s32.totalorder %v77, 32768
  %v598 = vsub.f32 0.0, %v572
  %v599 = vsub.f32 0.0, %v579
  %v600 = vsub.f32 0.0, %v586
  %v601 = vsub.f32 0.0, %v593
  %v602 = vsel %vm594, %v572, %v598
  %v603 = vsel %vm595, %v579, %v599
  %v604 = vsel %vm596, %v586, %v600
  %v605 = vsel %vm597, %v593, %v601
  %v606 = vmul.f32 %v138, %v244
  %v607 = vmul.f32 %v139, %v347
  %v608 = vmul.f32 %v140, %v450
  %v609 = vmul.f32 %v141, %v553
  %v610 = vmul.f32 %v138, %v602
  %v611 = vmul.f32 %v139, %v603
  %v612 = vmul.f32 %v140, %v604
  %v613 = vmul.f32 %v141, %v605
  %v614 = vld [vmem:[%s1] sm:$0xff]
  %v615 = vld [vmem:[%s1 + $0x8] sm:$0xff]
  %v624 = vcombine.low %v606, %v607
  %v625 = vcombine.low %v608, %v609
  %v627 = vunpack.c.l.s4 1983009808
  %v628 = vunpack.c.0.s8 %v627
  %v629 = vlaneseq
  %v630 = vshrl.u32 %v629, 7
  %v631 = vsub.s32 %v628, %v630
  %v632 = vrot.slane %v624, %v631
  %v634 = vunpack.c.l.s4 1983009808
  %v635 = vunpack.c.0.s8 %v634
  %v636 = vlaneseq
  %v637 = vshrl.u32 %v636, 7
  %v638 = vsub.s32 %v635, %v637
  %v639 = vrot.slane %v625, %v638
  %v640 = vcombine.low %v632, %v639
  %v641 = vcombine.low %v610, %v611
  %v642 = vcombine.low %v612, %v613
  %v644 = vunpack.c.l.s4 1983009808
  %v645 = vunpack.c.0.s8 %v644
  %v646 = vlaneseq
  %v647 = vshrl.u32 %v646, 7
  %v648 = vsub.s32 %v645, %v647
  %v649 = vrot.slane %v641, %v648
  %v651 = vunpack.c.l.s4 1983009808
  %v652 = vunpack.c.0.s8 %v651
  %v653 = vlaneseq
  %v654 = vshrl.u32 %v653, 7
  %v655 = vsub.s32 %v652, %v654
  %v656 = vrot.slane %v642, %v655
  %v657 = vcombine.low %v649, %v656
  %v660 = vadd.f32 %v614, %v640
  %v661 = vadd.f32 %v615, %v657
  %662 = vst [vmem:[%s2] sm:$0xff] %v660
  %663 = vst [vmem:[%s2 + $0x8] sm:$0xff] %v661
  // Predicated region
  $region6: #{gaussian_noise.1} parent=0 // pred_check
    _
  $region7: #{gaussian_noise.1} parent=0 // pred_check_branch
    %665 = sbr.rel (0) target = $region9
  $region8: #{gaussian_noise.1} parent=0 // pred_region
    _
  $region9: #{gaussian_noise.1} parent=0 // pred_fallthru
    _
  // Predicated region
  $region10: #{gaussian_noise.1} parent=0 // pred_check
    _
  $region11: #{gaussian_noise.1} parent=0 // pred_check_branch
    %667 = sbr.rel (0) target = $region13
  $region12: #{gaussian_noise.1} parent=0 // pred_region
    _
  $region13: #{gaussian_noise.1} parent=0 // pred_fallthru
    _

</llo_original>
